<compile_context>
chip_gen: v7x
topology: tpu7x:2x2x1
jax: 0.10.0
libtpu: 0.0.40
codegen_flags: <defaults>
</compile_context>

<pallas_src>
import functools

import jax
import jax.numpy as jnp
from jax import lax
from jax.experimental import pallas as pl
from jax.experimental.pallas import tpu as pltpu

EPS = 1e-5
_LANE = 128
_SUBLANE = 8


def _round_up(a, b):
    return (a + b - 1) // b * b


def _vmem_budgets():
    """Generation-aware VMEM budgets (v7x: 64 MiB/TC, v5e/v6e: 128 MiB)."""
    try:
        cap = int(pltpu.get_tpu_info().vmem_capacity_bytes)
    except Exception:
        cap = 64 * 1024 * 1024                    # conservative fallback
    vmem_limit = min(int(cap * 0.70), 112 * 1024 * 1024)
    tile_budget = min(int(cap * 0.30), 48 * 1024 * 1024)
    return vmem_limit, tile_budget


_BUFFERED_ONE_OK = None


def _single_buffer_ok():
    """Probe whether pipeline_mode=pl.Buffered(1) is usable on this JAX/TPU."""
    global _BUFFERED_ONE_OK
    if _BUFFERED_ONE_OK is None:
        try:
            def probe(c_ref, x_ref, o_ref):
                o_ref[...] = x_ref[...] + c_ref[...]

            c = jnp.ones((_SUBLANE, _LANE), jnp.float32)
            xx = jnp.ones((2 * _SUBLANE, _LANE), jnp.float32)
            out = pl.pallas_call(
                probe,
                out_shape=jax.ShapeDtypeStruct((2 * _SUBLANE, _LANE), jnp.float32),
                grid=(2,),
                in_specs=[
                    pl.BlockSpec((_SUBLANE, _LANE), lambda i: (0, 0),
                                 pipeline_mode=pl.Buffered(1)),
                    pl.BlockSpec((_SUBLANE, _LANE), lambda i: (i, 0)),
                ],
                out_specs=pl.BlockSpec((_SUBLANE, _LANE), lambda i: (i, 0)),
            )(c, xx)
            _BUFFERED_ONE_OK = bool(jnp.all(out == 2.0))
        except Exception:
            _BUFFERED_ONE_OK = False
    return _BUFFERED_ONE_OK


def _spec(block_shape, index_map, single_buffer=False):
    """BlockSpec; single-buffered when the block never changes (saves VMEM)."""
    if single_buffer and _single_buffer_ok():
        return pl.BlockSpec(block_shape, index_map, pipeline_mode=pl.Buffered(1))
    return pl.BlockSpec(block_shape, index_map)


# --------------------------------------------------------------------------- #
# Kernels
# --------------------------------------------------------------------------- #
def _fused_kernel(x_ref, w_ref, gamma_ref, beta_ref, o_ref, *, n_valid, n_pad, eps):
    # Single shot: matmul once, batch stats (mean-centered variance, robust to
    # cancellation) and the folded affine + ReLU, all without leaving VMEM.
    y = jnp.dot(x_ref[...], w_ref[...], preferred_element_type=jnp.float32)
    inv_n = jnp.float32(1.0 / n_valid)
    mean = jnp.sum(y, axis=0, keepdims=True) * inv_n       # zero-padded rows add 0
    c = y - mean
    css = jnp.sum(c * c, axis=0, keepdims=True)
    # padded rows each contribute (0 - mean)^2; remove them exactly.
    css = css - jnp.float32(n_pad - n_valid) * (mean * mean)
    var = jnp.maximum(css * inv_n, 0.0)
    inv_std = lax.rsqrt(var + jnp.float32(eps))
    scale = gamma_ref[...] * inv_std
    shift = beta_ref[...] - mean * scale
    o_ref[...] = jnp.maximum(y * scale + shift, 0.0).astype(o_ref.dtype)


def _stats_kernel(x_ref, w_ref, sum_ref, sq_ref):
    # x_ref: (TM, in_f); w_ref: (in_f, TN) -> y: (TM, TN) f32 on the MXU.
    y = jnp.dot(x_ref[...], w_ref[...], preferred_element_type=jnp.float32)

    @pl.when(pl.program_id(2) == 0)
    def _():
        sum_ref[...] = jnp.zeros_like(sum_ref)
        sq_ref[...] = jnp.zeros_like(sq_ref)

    sum_ref[...] += jnp.sum(y, axis=0, keepdims=True)
    sq_ref[...] += jnp.sum(y * y, axis=0, keepdims=True)


def _norm_kernel(x_ref, w_ref, scale_ref, shift_ref, o_ref):
    # Recompute the cheap small-K matmul (avoids spilling y to HBM), then the
    # folded BatchNorm affine + ReLU, lane-dense store.
    y = jnp.dot(x_ref[...], w_ref[...], preferred_element_type=jnp.float32)
    o_ref[...] = jnp.maximum(y * scale_ref[...] + shift_ref[...], 0.0).astype(o_ref.dtype)


# --------------------------------------------------------------------------- #
# Wrapper
# --------------------------------------------------------------------------- #
def block_forward(x, weight, gamma, beta, eps=EPS, *, matmul_dtype=None, fuse=None):
    """Forward pass of Block (training-mode BatchNorm statistics).

    x: (B, T, in_f); weight: (out_f, in_f) PyTorch nn.Linear layout;
    gamma/beta: (out_f,).  Returns (B, T, out_f) in x.dtype.
    matmul_dtype: optional reduced-precision MXU feed (e.g. jnp.bfloat16);
      accumulation / statistics stay in f32.  Default None keeps input dtype.
    fuse: None = auto (by VMEM budget); True / False force fused / two-pass.
    """
    B, T, in_f = x.shape
    out_f = weight.shape[0]
    N = B * T

    vmem_limit, tile_budget = _vmem_budgets()

    x2d = x.reshape(N, in_f)
    wT = weight.T                                  # one-time (in_f, out_f) transpose in HBM
    if matmul_dtype is not None:
        x2d = x2d.astype(matmul_dtype)
        wT = wT.astype(matmul_dtype)
    x_isz = x2d.dtype.itemsize
    w_isz = wT.dtype.itemsize
    out_isz = x.dtype.itemsize
    row_align = _SUBLANE if x_isz >= 4 else 2 * _SUBLANE      # bf16 sublane packing

    # ---- Output-feature tiling: lane-dense OF, weight block bounded so its
    # VMEM residency is actually covered by the tile budget. -------------------
    of128 = _round_up(out_f, _LANE)
    w_budget = min(tile_budget // 3, 8 * 1024 * 1024)
    tn_cap = max(_LANE, min(of128, (w_budget // max(in_f * w_isz, 1)) // _LANE * _LANE))
    n_of = pl.cdiv(of128, tn_cap)
    TN = pl.cdiv(of128 // _LANE, n_of) * _LANE
    OF = n_of * TN
    # TODO(synk): add a K (in_f) grid axis with a VMEM f32 accumulator when a
    # single (in_f, TN) weight block would still exceed the budget.

    gamma_p = gamma.astype(jnp.float32)
    beta_p = beta.astype(jnp.float32)
    if OF != out_f:
        wT = jnp.pad(wT, ((0, 0), (0, OF - out_f)))
        gamma_p = jnp.pad(gamma_p, (0, OF - out_f))
        beta_p = jnp.pad(beta_p, (0, OF - out_f))
    gamma_p = gamma_p.reshape(1, OF)
    beta_p = beta_p.reshape(1, OF)

    # ---- Fused single-call fast path -----------------------------------------
    n_pad_f = _round_up(N, row_align)
    y_bytes = n_pad_f * OF * 4
    fused_bytes = (n_pad_f * in_f * x_isz + in_f * OF * w_isz
                   + n_pad_f * OF * out_isz + 3 * y_bytes + 4 * OF * 4)
    use_fused = fuse if fuse is not None else (fused_bytes <= tile_budget)

    if use_fused:
        xf = x2d if n_pad_f == N else jnp.pad(x2d, ((0, n_pad_f - N), (0, 0)))
        out_pad = pl.pallas_call(
            functools.partial(_fused_kernel, n_valid=N, n_pad=n_pad_f, eps=float(eps)),
            out_shape=jax.ShapeDtypeStruct((n_pad_f, OF), x.dtype),
            in_specs=[pl.BlockSpec(memory_space=pltpu.MemorySpace.VMEM)] * 4,
            out_specs=pl.BlockSpec(memory_space=pltpu.MemorySpace.VMEM),
            compiler_params=pltpu.CompilerParams(vmem_limit_bytes=vmem_limit),
        )(xf, wT, gamma_p, beta_p)
        return out_pad[:N, :out_f].reshape(B, T, out_f)

    # ---- Two-pass tiled path --------------------------------------------------
    single_w = (n_of == 1)            # weight / scale / shift index maps constant
    w_bufs = 1 if (single_w and _single_buffer_ok()) else 2
    fixed = w_bufs * in_f * TN * w_isz + 64 * 1024
    # x + out tiles (double-buffered) plus the y and y*y f32 temporaries.
    per_row = x_isz * (2 * in_f + 2 * TN) + 8 * TN
    avail = max(tile_budget - fixed, per_row * _SUBLANE)
    TM = max(_SUBLANE, avail // per_row)
    if TM >= 2048:
        TM = 2048
    elif TM >= 256:
        TM = TM // 256 * 256          # full MXU rows (also a 128-multiple for v5e)
    else:
        TM = (TM // row_align * row_align) or row_align
    if N <= TM:
        TM = _round_up(N, row_align)

    n_tiles = pl.cdiv(N, TM)
    n_split = 2 if n_tiles >= 2 else 1     # shard pass-1 across both TCs on v7x
    n_inner = pl.cdiv(n_tiles, n_split)
    n_tiles = n_split * n_inner
    N_pad = n_tiles * TM
    if N_pad != N:
        # Zero rows contribute 0 to sum / sum-of-squares (Linear has no bias);
        # stats divide by the true N and padded output rows are sliced off.
        x2d = jnp.pad(x2d, ((0, N_pad - N), (0, 0)))

    matmul_flops = 2 * N_pad * in_f * OF
    x_bytes = N_pad * in_f * x_isz
    w_bytes = in_f * OF * w_isz

    # ---- Pass 1: per-channel sum / sum-of-squares, per-shard partial sums ----
    psums, psqs = pl.pallas_call(
        _stats_kernel,
        out_shape=(jax.ShapeDtypeStruct((n_split, 1, OF), jnp.float32),
                   jax.ShapeDtypeStruct((n_split, 1, OF), jnp.float32)),
        grid=(n_split, n_of, n_inner),
        in_specs=[
            pl.BlockSpec((TM, in_f), lambda c, o, i: (c * n_inner + i, 0)),
            _spec((in_f, TN), lambda c, o, i: (0, o), single_buffer=single_w),
        ],
        out_specs=(
            pl.BlockSpec((None, 1, TN), lambda c, o, i: (c, 0, o)),
            pl.BlockSpec((None, 1, TN), lambda c, o, i: (c, 0, o)),
        ),
        compiler_params=pltpu.CompilerParams(
            dimension_semantics=("parallel", "parallel", "arbitrary"),
            vmem_limit_bytes=vmem_limit),
        cost_estimate=pl.CostEstimate(
            flops=matmul_flops + 3 * N_pad * OF, transcendentals=0,
            bytes_accessed=n_of * x_bytes + w_bytes + 2 * n_split * OF * 4),
    )(x2d, wT)

    # ---- Fold BN (training-mode batch stats, biased variance) into scale/shift
    inv_n = jnp.float32(1.0 / N)
    sums = jnp.sum(psums, axis=(0, 1)).reshape(1, OF)
    sqs = jnp.sum(psqs, axis=(0, 1)).reshape(1, OF)
    mean = sums * inv_n
    # TODO(synk): E[y^2]-E[y]^2 in f32 can lose precision when |mean| >> std;
    # use a centered second reduction if tighter BatchNorm parity is required.
    var = jnp.maximum(sqs * inv_n - mean * mean, 0.0)
    inv_std = lax.rsqrt(var + jnp.float32(eps))
    scale = gamma_p * inv_std                    # (1, OF) f32
    shift = beta_p - mean * scale                # (1, OF) f32

    # ---- Pass 2: recompute matmul per tile, folded affine + ReLU (parallel) --
    out_pad = pl.pallas_call(
        _norm_kernel,
        out_shape=jax.ShapeDtypeStruct((N_pad, OF), x.dtype),
        grid=(n_of, n_tiles),
        in_specs=[
            pl.BlockSpec((TM, in_f), lambda o, i: (i, 0)),
            _spec((in_f, TN), lambda o, i: (0, o), single_buffer=single_w),
            _spec((1, TN), lambda o, i: (0, o), single_buffer=single_w),
            _spec((1, TN), lambda o, i: (0, o), single_buffer=single_w),
        ],
        out_specs=pl.BlockSpec((TM, TN), lambda o, i: (i, o)),
        compiler_params=pltpu.CompilerParams(
            dimension_semantics=("parallel", "parallel"),
            vmem_limit_bytes=vmem_limit),
        cost_estimate=pl.CostEstimate(
            flops=matmul_flops + 3 * N_pad * OF, transcendentals=0,
            bytes_accessed=n_of * x_bytes + w_bytes + N_pad * OF * out_isz + 4 * OF * 4),
    )(x2d, wT, scale, shift)

    # TODO(synk): running_mean / running_var (BatchNorm momentum buffers) are
    # not produced; this implements the training-mode forward output only.
    # TODO(synk): for strong down-projections on v5e (in_f >> out_f), spilling
    # y as bf16 in pass 1 and reloading it in pass 2 beats the recompute.
    return out_pad[:N, :out_f].reshape(B, T, out_f)


# --------------------------------------------------------------------------- #
# Self-test
# --------------------------------------------------------------------------- #
if __name__ == "__main__":
    key = jax.random.PRNGKey(0)

    def reference(x, weight, gamma, beta, eps=EPS):
        Bb, Tt, fin = x.shape
        y = jnp.dot(x.reshape(-1, fin), weight.T, precision=lax.Precision.HIGHEST)
        mu = y.mean(axis=0, keepdims=True)
        var = ((y - mu) ** 2).mean(axis=0, keepdims=True)
        out = jnp.maximum(gamma * (y - mu) / jnp.sqrt(var + eps) + beta, 0.0)
        return out.reshape(Bb, Tt, -1)

    # --- small case: exercises the fused single-pallas_call path -------------
    B, T, in_f, out_f = 2, 8, 32, 16
    k1, k2, k3, k4, k5, k6 = jax.random.split(key, 6)
    x = jax.random.normal(k1, (B, T, in_f), dtype=jnp.float32)
    bound = 1.0 / (in_f ** 0.5)
    weight = jax.random.uniform(k2, (out_f, in_f), jnp.float32, -bound, bound)
    gamma = jnp.ones((out_f,), jnp.float32)      # nn.BatchNorm1d init
    beta = jnp.zeros((out_f,), jnp.float32)

    out = block_forward(x, weight, gamma, beta)
    jax.block_until_ready(out)
    ref = reference(x, weight, gamma, beta)
    assert out.shape == (B, T, out_f)
    assert jnp.allclose(out, ref, atol=1e-4, rtol=1e-4), "fused path mismatch"

    # --- larger case: forces the two-pass tiled path (sharded stats + norm) --
    B2, T2, in_f2, out_f2 = 4, 2048, 128, 192
    x2 = jax.random.normal(k3, (B2, T2, in_f2), dtype=jnp.float32)
    bound2 = 1.0 / (in_f2 ** 0.5)
    w2 = jax.random.uniform(k4, (out_f2, in_f2), jnp.float32, -bound2, bound2)
    g2 = 1.0 + 0.1 * jax.random.normal(k5, (out_f2,), dtype=jnp.float32)
    b2 = 0.05 * jax.random.normal(k6, (out_f2,), dtype=jnp.float32)

    out2 = block_forward(x2, w2, g2, b2, fuse=False)
    jax.block_until_ready(out2)
    ref2 = reference(x2, w2, g2, b2)
    assert out2.shape == (B2, T2, out_f2)
    assert jnp.allclose(out2, ref2, atol=2e-3, rtol=2e-3), "two-pass path mismatch"

    print("KERNEL_OK")
</pallas_src>

<mosaic_0001>
module attributes {stable_mosaic.version = 11 : i64} {
  func.func @_fused_kernel(%arg0: memref<16x32xf32, #tpu.memory_space<vmem>>, %arg1: memref<32x128xf32, #tpu.memory_space<vmem>>, %arg2: memref<1x128xf32, #tpu.memory_space<vmem>>, %arg3: memref<1x128xf32, #tpu.memory_space<vmem>>, %arg4: memref<16x128xf32, #tpu.memory_space<vmem>>) attributes {dimension_semantics = [], scalar_prefetch = 0 : i64, scratch_operands = 0 : i64, tpu.core_type = #tpu.core_type<tc>} {
    %c0 = arith.constant 0 : index
    %c0_0 = arith.constant 0 : index
    %0 = vector.load %arg0[%c0, %c0_0] : memref<16x32xf32, #tpu.memory_space<vmem>>, vector<16x32xf32>
    %c0_1 = arith.constant 0 : index
    %c0_2 = arith.constant 0 : index
    %1 = vector.load %arg1[%c0_1, %c0_2] : memref<32x128xf32, #tpu.memory_space<vmem>>, vector<32x128xf32>
    %cst = arith.constant dense<0.000000e+00> : vector<16x128xf32>
    %2 = tpu.matmul %0, %1, %cst {dimension_numbers = #tpu.dot_dimension_numbers<[1], [0], [0], [1], [0, 0, 1, 1], [], []>} : vector<16x32xf32>, vector<32x128xf32>, vector<16x128xf32> -> vector<16x128xf32>
    %cst_3 = arith.constant dense<0.000000e+00> : vector<128xf32>
    %3 = vector.multi_reduction <add>, %2, %cst_3 [0] : vector<16x128xf32> to vector<128xf32>
    %4 = vector.shape_cast %3 : vector<128xf32> to vector<1x128xf32>
    %cst_4 = arith.constant 6.250000e-02 : f32
    %5 = vector.broadcast %cst_4 : f32 to vector<1x128xf32>
    %6 = arith.mulf %4, %5 : vector<1x128xf32>
    %7 = vector.broadcast %6 : vector<1x128xf32> to vector<16x128xf32>
    %8 = arith.subf %2, %7 : vector<16x128xf32>
    %9 = arith.mulf %8, %8 : vector<16x128xf32>
    %cst_5 = arith.constant dense<0.000000e+00> : vector<128xf32>
    %10 = vector.multi_reduction <add>, %9, %cst_5 [0] : vector<16x128xf32> to vector<128xf32>
    %11 = vector.shape_cast %10 : vector<128xf32> to vector<1x128xf32>
    %12 = arith.mulf %6, %6 : vector<1x128xf32>
    %cst_6 = arith.constant 0.000000e+00 : f32
    %13 = vector.broadcast %cst_6 : f32 to vector<1x128xf32>
    %14 = arith.mulf %13, %12 : vector<1x128xf32>
    %15 = arith.subf %11, %14 : vector<1x128xf32>
    %cst_7 = arith.constant 6.250000e-02 : f32
    %16 = vector.broadcast %cst_7 : f32 to vector<1x128xf32>
    %17 = arith.mulf %15, %16 : vector<1x128xf32>
    %cst_8 = arith.constant 0.000000e+00 : f32
    %18 = vector.broadcast %cst_8 : f32 to vector<1x128xf32>
    %19 = arith.maximumf %17, %18 : vector<1x128xf32>
    %cst_9 = arith.constant 9.99999974E-6 : f32
    %20 = vector.broadcast %cst_9 : f32 to vector<1x128xf32>
    %21 = arith.addf %19, %20 : vector<1x128xf32>
    %22 = math.rsqrt %21 : vector<1x128xf32>
    %c0_10 = arith.constant 0 : index
    %c0_11 = arith.constant 0 : index
    %23 = vector.load %arg2[%c0_10, %c0_11] : memref<1x128xf32, #tpu.memory_space<vmem>>, vector<1x128xf32>
    %24 = arith.mulf %23, %22 : vector<1x128xf32>
    %c0_12 = arith.constant 0 : index
    %c0_13 = arith.constant 0 : index
    %25 = vector.load %arg3[%c0_12, %c0_13] : memref<1x128xf32, #tpu.memory_space<vmem>>, vector<1x128xf32>
    %26 = arith.mulf %6, %24 : vector<1x128xf32>
    %27 = arith.subf %25, %26 : vector<1x128xf32>
    %28 = vector.broadcast %24 : vector<1x128xf32> to vector<16x128xf32>
    %29 = arith.mulf %2, %28 : vector<16x128xf32>
    %30 = vector.broadcast %27 : vector<1x128xf32> to vector<16x128xf32>
    %31 = arith.addf %29, %30 : vector<16x128xf32>
    %cst_14 = arith.constant 0.000000e+00 : f32
    %32 = vector.broadcast %cst_14 : f32 to vector<16x128xf32>
    %33 = arith.maximumf %31, %32 : vector<16x128xf32>
    %c0_15 = arith.constant 0 : index
    %c0_16 = arith.constant 0 : index
    %34 = vector.load %arg4[%c0_15, %c0_16] : memref<16x128xf32, #tpu.memory_space<vmem>>, vector<16x128xf32>
    tpu.vector_store %arg4[%c0_15, %c0_16], %33 {strides = array<i32>} : memref<16x128xf32, #tpu.memory_space<vmem>>, vector<16x128xf32>,
    return
  }
}

</mosaic_0001>

<llo_original>
// kernel: tpu_custom_call.1
$region0: #{tpu_custom_call.1}
  #allocation0 [shape = 'u32[]', space=smem, size = 0x4, offset = 0x4, fixed_abs, tag = 'smem constant byte address 0x4 - core index']
  #allocation1 [shape = 'u32[144,128]{1,0:T(1,128)}', space=vmem, size = 0x12000, scoped, tag = 'internal scratch']
  %s0 = inlined_call_operand.hbm [shape: f32[16,32], index: 0, kind: input, shape index: {}]
  %s1 = inlined_call_operand.hbm [shape: f32[32,128], index: 1, kind: input, shape index: {}]
  %s2 = inlined_call_operand.vmem [shape: f32[1,128], index: 2, kind: input, shape index: {}]
  %s3 = inlined_call_operand.vmem [shape: f32[1,128], index: 3, kind: input, shape index: {}]
  %s4 = inlined_call_operand.hbm [shape: f32[16,128], index: 4, kind: output, shape index: {}]
  %s5 = sld [smem:[#allocation0]]
  $region34: #{tpu_custom_call.1} parent=0
    _
  %s7 = ssub.s32 1, %s5
  %s8 = scalar_select 0, %s7, %s5
  $region1: #{tpu_custom_call.1} parent=0
    #allocation2 [shape = 'u8[8192]{0}', space=vmem, size = 0x2000, scoped, tag = 'input window, operand 0, single buffered']
    #allocation3 [shape = 's32[1]{0}', space=sflag, size = 0x4, scoped, tag = 'scoped memory for tpu_custom_call.1']
    #allocation4 [shape = 's32[1]{0}', space=sflag, size = 0x4, scoped, tag = 'scoped memory for tpu_custom_call.1']
    #allocation5 [shape = 'u8[16384]{0}', space=vmem, size = 0x4000, scoped, tag = 'input window, operand 1, single buffered']
    #allocation6 [shape = 's32[1]{0}', space=sflag, size = 0x4, scoped, tag = 'scoped memory for tpu_custom_call.1']
    #allocation7 [shape = 'u8[8192]{0}', space=vmem, size = 0x2000, scoped, tag = 'output window, operand 0, single buffered']
    %9 = vsyncpa [#allocation3], 0
    %10 = vsyncpa [#allocation6], 0
    %11 = vsyncpa [#allocation4], 0
    // Predicated region
    $region2: #{tpu_custom_call.1} parent=1 // pred_check
      _
    $region3: #{tpu_custom_call.1} parent=1 // pred_check_branch
      %13 = sbr.rel (0) target = $region5
    $region4: #{tpu_custom_call.1} parent=1 // pred_region
      %s15 = ssub.s32 256, 256
      %16 = vsyncadd [#allocation3], %s15
      %s17 = sshll.u32 [#allocation2], 4
      %s18 = int_to_ptr.vmem [resolvable:$true] %s17
      %23 = dma.hbm_to_vmem [thread:$0]  %s0, 256, %s18, [#allocation3], 128, 128, 8
    $region5: #{tpu_custom_call.1} parent=1 // pred_fallthru
      _
    // Predicated region
    $region6: #{tpu_custom_call.1} parent=1 // pred_check
      _
    $region7: #{tpu_custom_call.1} parent=1 // pred_check_branch
      %25 = sbr.rel (0) target = $region9
    $region8: #{tpu_custom_call.1} parent=1 // pred_region
      %s27 = ssub.s32 512, 512
      %28 = vsyncadd [#allocation6], %s27
      %s29 = sshll.u32 [#allocation5], 4
      %s30 = int_to_ptr.vmem [resolvable:$true] %s29
      %35 = dma.hbm_to_vmem [thread:$0]  %s1, 512, %s30, [#allocation6], 128, 128, 8
    $region9: #{tpu_custom_call.1} parent=1 // pred_fallthru
      _
    // Predicated region
    $region10: #{tpu_custom_call.1} parent=1 // pred_check
      _
    $region11: #{tpu_custom_call.1} parent=1 // pred_check_branch
      %37 = sbr.rel (0) target = $region13
    $region12: #{tpu_custom_call.1} parent=1 // pred_region
      _
    $region13: #{tpu_custom_call.1} parent=1 // pred_fallthru
      _
    // Predicated region
    $region14: #{tpu_custom_call.1} parent=1 // pred_check
      _
    $region15: #{tpu_custom_call.1} parent=1 // pred_check_branch
      %39 = sbr.rel (0) target = $region17
    $region16: #{tpu_custom_call.1} parent=1 // pred_region
      _
    $region17: #{tpu_custom_call.1} parent=1 // pred_fallthru
      _
    // Predicated region
    $region18: #{tpu_custom_call.1} parent=1 // pred_check
      _
    $region19: #{tpu_custom_call.1} parent=1 // pred_check_branch
      %41 = sbr.rel (0) target = $region21
    $region20: #{tpu_custom_call.1} parent=1 // pred_region
      %42 = dma.done [#allocation3], 256
    $region21: #{tpu_custom_call.1} parent=1 // pred_fallthru
      _
    // Predicated region
    $region22: #{tpu_custom_call.1} parent=1 // pred_check
      _
    $region23: #{tpu_custom_call.1} parent=1 // pred_check_branch
      %44 = sbr.rel (0) target = $region25
    $region24: #{tpu_custom_call.1} parent=1 // pred_region
      %45 = dma.done [#allocation6], 512
    $region25: #{tpu_custom_call.1} parent=1 // pred_fallthru
      _
    %v46 = vld [vmem:[#allocation2] sm:$0xff]
    %v47 = vld [vmem:[#allocation2 + $0x8] sm:$0xff]
    %v48 = vld [vmem:[#allocation5] sm:$0xff]
    %v49 = vld [vmem:[#allocation5 + $0x8] sm:$0xff]
    %v50 = vld [vmem:[#allocation5 + $0x10] sm:$0xff]
    %v51 = vld [vmem:[#allocation5 + $0x18] sm:$0xff]
    %vm52 = vcmask 261120
    %v54 = vsel %vm52, %v46, 0
    %v57 = vsel %vm52, %v47, 0
    %59 = vmatprep.subr.mxu0 0.0
    %60 = vmatpush1.msra.mxu0 %v48
    %61 = vmatprep.subr.mxu0 0.0
    %62 = vmatpush1.msra.mxu0 %v49
    %63 = vmatprep.subr.mxu0 0.0
    %64 = vmatpush1.msra.mxu0 %v50
    %65 = vmatprep.subr.mxu0 0.0
    %66 = vmatpush1.msra.mxu0 %v51
    %67 = vmatprep.subr.mxu0 0.0
    %68 = vmatpush1.msra.mxu0 0.0
    %69 = vmatprep.subr.mxu0 0.0
    %70 = vmatpush1.msra.mxu0 0.0
    %71 = vmatprep.subr.mxu0 0.0
    %72 = vmatpush1.msra.mxu0 0.0
    %73 = vmatprep.subr.mxu0 0.0
    %74 = vmatpush1.msra.mxu0 0.0
    %75 = vmatprep.subr.mxu0 0.0
    %76 = vmatpush1.msra.mxu0 0.0
    %77 = vmatprep.subr.mxu0 0.0
    %78 = vmatpush1.msra.mxu0 0.0
    %79 = vmatprep.subr.mxu0 0.0
    %80 = vmatpush1.msra.mxu0 0.0
    %81 = vmatprep.subr.mxu0 0.0
    %82 = vmatpush1.msra.mxu0 0.0
    %83 = vmatprep.subr.mxu0 0.0
    %84 = vmatpush1.msra.mxu0 0.0
    %85 = vmatprep.subr.mxu0 0.0
    %86 = vmatpush1.msra.mxu0 0.0
    %87 = vmatprep.subr.mxu0 0.0
    %88 = vmatpush1.msra.mxu0 0.0
    %89 = vmatprep.subr.mxu0 0.0
    %90 = vmatpush1.msra.mxu0 0.0
    %91 = vmatprep.subr.mxu0 0.0
    %92 = vmatpush1.msra.mxu0 0.0
    %93 = vmatprep.subr.mxu0 0.0
    %94 = vmatpush1.msra.mxu0 0.0
    %95 = vmatprep.subr.mxu0 0.0
    %96 = vmatpush1.msra.mxu0 0.0
    %97 = vmatprep.subr.mxu0 0.0
    %98 = vmatpush1.msra.mxu0 0.0
    %99 = vmatprep.subr.mxu0 0.0
    %100 = vmatpush1.msra.mxu0 0.0
    %101 = vmatprep.subr.mxu0 0.0
    %102 = vmatpush1.msra.mxu0 0.0
    %103 = vmatprep.subr.mxu0 0.0
    %104 = vmatpush1.msra.mxu0 0.0
    %105 = vmatprep.subr.mxu0 0.0
    %106 = vmatpush1.msra.mxu0 0.0
    %107 = vmatprep.subr.mxu0 0.0
    %108 = vmatpush1.msra.mxu0 0.0
    %109 = vmatprep.subr.mxu0 0.0
    %110 = vmatpush1.msra.mxu0 0.0
    %111 = vmatprep.subr.mxu0 0.0
    %112 = vmatpush1.msra.mxu0 0.0
    %113 = vmatprep.subr.mxu0 0.0
    %114 = vmatpush1.msra.mxu0 0.0
    %115 = vmatprep.subr.mxu0 0.0
    %116 = vmatpush1.msra.mxu0 0.0
    %117 = vmatprep.subr.mxu0 0.0
    %118 = vmatpush1.msra.mxu0 0.0
    %119 = vmatprep.subr.mxu0 0.0
    %120 = vmatpush1.msra.mxu0 0.0
    %121 = vmatprep.subr.mxu0 0.0
    %122 = vmatpush1.msra.mxu0 0.0
    %123 = vmatprep.mubr.f32.mxu0 0.0
    %124 = vmatmul.mubr.f32.gmra.mrb[0].mxu0 %v54
    %v125 = vpop.f32.mrb[0].mxu0
    %v126 = vadd.f32 0.0, %v125
    %v127 = vpop.f32.mrb[0].mxu0
    %128 = vmatprep.mubr.f32.mxu0 0.0
    %129 = vmatmul.mubr.f32.gmra.mrb[0].mxu0 %v57
    %v130 = vpop.f32.mrb[0].mxu0
    %v131 = vadd.f32 0.0, %v130
    %v132 = vpop.f32.mrb[0].mxu0
    %133 = vdwg.mxu0
    %v134 = vadd.f32 %v126, %v131
    %v135 = vrot.slane %v134, 4
    %v136 = vadd.f32 %v134, %v135
    %v137 = vrot.slane %v136, 2
    %v138 = vadd.f32 %v136, %v137
    %v139 = vrot.slane %v138, 1
    %v140 = vadd.f32 %v138, %v139
    %v141 = vmul.f32 %v140, 0.0625
    %v142 = vsub.f32 %v126, %v141
    %v143 = vsub.f32 %v131, %v141
    %v144 = vmul.f32 %v142, %v142
    %v145 = vmul.f32 %v143, %v143
    %v146 = vadd.f32 %v144, %v145
    %v147 = vrot.slane %v146, 4
    %v148 = vadd.f32 %v146, %v147
    %v149 = vrot.slane %v148, 2
    %v150 = vadd.f32 %v148, %v149
    %v151 = vrot.slane %v150, 1
    %v152 = vadd.f32 %v150, %v151
    %v153 = vmul.f32 %v141, %v141
    %v154 = vmul.f32 %v153, 0.0
    %v155 = vsub.f32 %v152, %v154
    %v156 = vmul.f32 %v155, 0.0625
    %v157 = vmax.f32 %v156, 0.0
    %v158 = vadd.f32 %v157, 1e-05
    %v159 = vrsqrt.pop %v158
    %v160 = vld [vmem:[%s2] sm:$0x1]
    %v161 = vmul.f32 %v160, %v159
    %v162 = vld [vmem:[%s3] sm:$0x1]
    %v163 = vmul.f32 %v141, %v161
    %v164 = vsub.f32 %v162, %v163
    %v166 = vlaneseq
    %v167 = vshrl.u32 %v166, 7
    %v168 = vsub.s32 0, %v167
    %v169 = vrot.slane %v161, %v168
    %v171 = vmul.f32 %v126, %v169
    %v172 = vmul.f32 %v131, %v169
    %v174 = vlaneseq
    %v175 = vshrl.u32 %v174, 7
    %v176 = vsub.s32 0, %v175
    %v177 = vrot.slane %v164, %v176
    %v179 = vadd.f32 %v171, %v177
    %v180 = vadd.f32 %v172, %v177
    %v181 = vmax.f32 %v179, 0.0
    %v182 = vmax.f32 %v180, 0.0
    %183 = vst [vmem:[#allocation7] sm:$0xff] %v181
    %184 = vst [vmem:[#allocation7 + $0x8] sm:$0xff] %v182
    // Predicated region
    $region26: #{tpu_custom_call.1} parent=1 // pred_check
      _
    $region27: #{tpu_custom_call.1} parent=1 // pred_check_branch
      %186 = sbr.rel (0) target = $region29
    $region28: #{tpu_custom_call.1} parent=1 // pred_region
      %s188 = ssub.s32 256, 256
      %189 = vsyncadd [#allocation4], %s188
      %s190 = sshll.u32 [#allocation7], 4
      %s191 = int_to_ptr.vmem [resolvable:$true] %s190
      %196 = dma.vmem_to_hbm [thread:$0]  %s191, 256, %s4, [#allocation4], 128, 128, 8
    $region29: #{tpu_custom_call.1} parent=1 // pred_fallthru
      _
    // Predicated region
    $region30: #{tpu_custom_call.1} parent=1 // pred_check
      _
    $region31: #{tpu_custom_call.1} parent=1 // pred_check_branch
      %198 = sbr.rel (0) target = $region33
    $region32: #{tpu_custom_call.1} parent=1 // pred_region
      %199 = dma.done [#allocation4], 256
    $region33: #{tpu_custom_call.1} parent=1 // pred_fallthru
      _
    %200 = vsyncpa [#allocation3], 1
    %201 = vsyncpa [#allocation6], 1
    %202 = vsyncpa [#allocation4], 1

</llo_original>
